<compile_context>
chip_gen: v5e
topology: v5e:2x2
jax: 0.10.0
libtpu: 0.0.40
codegen_flags: <defaults>
</compile_context>

<pallas_src>
import jax
import jax.numpy as jnp
from jax import lax
from jax.experimental import pallas as pl
from jax.experimental.pallas import tpu as pltpu


# ------------------------------------------------------------------ VMEM budget

def _vmem_limit_bytes():
    """Generation-aware scoped-VMEM limit: ~75% of physical, capped at 96 MiB.
    v7x (64 MiB physical) -> 48 MiB; v5e/v6e (128 MiB physical) -> 96 MiB."""
    try:
        cap = int(pltpu.get_tpu_info().vmem_capacity_bytes)
    except Exception:
        cap = 64 * 1024 * 1024  # conservative (v7x-sized) fallback
    return min((cap * 3) // 4, 96 * 1024 * 1024)


# ------------------------------------------------------------- fused (1-step) path

def _fused_normalize_kernel(adj_ref, out_ref):
    # adj_ref / out_ref: (n, n), fully VMEM-resident.
    A = jnp.maximum(adj_ref[...].astype(jnp.float32), 0.0)       # ReLU      (VPU)
    deg = jnp.sum(A, axis=1, keepdims=True)                      # (n,1)     (XLU)
    dinv_col = lax.rsqrt(deg + 1e-10)                            # (n,1)     (EUP)
    dinv_row = jnp.transpose(dinv_col)                           # (1,n) one small XLU transpose
    out_ref[...] = (dinv_col * A * dinv_row).astype(out_ref.dtype)


def _normalize_adj_fused(adj, out_dtype, vmem_limit):
    n = adj.shape[0]
    out_bytes = jnp.dtype(out_dtype).itemsize
    cost = pl.CostEstimate(
        flops=4 * n * n,
        transcendentals=n,                      # rsqrt per row
        bytes_accessed=n * n * (4 + out_bytes),
    )
    return pl.pallas_call(
        _fused_normalize_kernel,
        out_shape=jax.ShapeDtypeStruct((n, n), out_dtype),
        grid_spec=pltpu.PrefetchScalarGridSpec(
            num_scalar_prefetch=0,
            grid=(1,),
            in_specs=[pl.BlockSpec((n, n), lambda i: (0, 0))],
            out_specs=pl.BlockSpec((n, n), lambda i: (0, 0)),
        ),
        compiler_params=pltpu.CompilerParams(
            dimension_semantics=("arbitrary",),
            vmem_limit_bytes=vmem_limit,
        ),
        cost_estimate=cost,
    )(adj)


# ---------------------------------------------------------- tiled (large-n) fallback

def _tiled_scale_kernel(adj_ref, dcol_ref, drow_ref, out_ref):
    # adj_ref : (tn, n) row-tile | dcol_ref: (tn, 1) | drow_ref: (1, n) | out_ref: (tn, n)
    A = jnp.maximum(adj_ref[...].astype(jnp.float32), 0.0)
    out_ref[...] = (dcol_ref[...] * A * drow_ref[...]).astype(out_ref.dtype)


def _pick_row_tile(n, vmem_limit, out_bytes):
    """Largest 8-aligned row tile whose double-buffered in+out tiles fit the
    scoped-VMEM budget (leaves ~15% headroom for dinv buffers / scratch)."""
    per_row = 2 * n * (4 + out_bytes)            # double-buffered adj-in + L-out
    tn = (int(vmem_limit * 0.85) // per_row)
    return max(8, min(n, (tn // 8) * 8))


def _normalize_adj_tiled(adj, out_dtype, vmem_limit, row_tile):
    n = adj.shape[0]
    # Two-pass fallback (adj too big for a VMEM-resident fused kernel):
    # dinv computed once in XLA, then a streaming row-tiled scale kernel.
    A_sum = jnp.sum(jnp.maximum(adj.astype(jnp.float32), 0.0), axis=1)
    dinv = lax.rsqrt(A_sum + 1e-10)
    dinv_col = dinv.reshape(n, 1)
    dinv_row = dinv.reshape(1, n)

    out_bytes = jnp.dtype(out_dtype).itemsize
    if row_tile is not None:
        tn = max(8, min(n, (row_tile // 8) * 8))
    else:
        tn = _pick_row_tile(n, vmem_limit, out_bytes)
    grid = (pl.cdiv(n, tn),)

    cost = pl.CostEstimate(
        flops=3 * n * n,
        transcendentals=0,                       # rsqrt done in the XLA prologue
        bytes_accessed=n * n * (4 + out_bytes) + 8 * n,
    )
    return pl.pallas_call(
        _tiled_scale_kernel,
        out_shape=jax.ShapeDtypeStruct((n, n), out_dtype),
        grid_spec=pltpu.PrefetchScalarGridSpec(
            num_scalar_prefetch=0,
            grid=grid,
            in_specs=[
                pl.BlockSpec((tn, n), lambda i: (i, 0)),   # adj row-tile
                pl.BlockSpec((tn, 1), lambda i: (i, 0)),   # dinv for this tile's rows
                pl.BlockSpec((1, n), lambda i: (0, 0)),    # dinv for all columns
            ],
            out_specs=pl.BlockSpec((tn, n), lambda i: (i, 0)),
        ),
        compiler_params=pltpu.CompilerParams(
            dimension_semantics=("parallel",),             # shards rows across v7x's 2 TCs
            vmem_limit_bytes=vmem_limit,
        ),
        cost_estimate=cost,
    )(adj, dinv_col, dinv_row)


# ----------------------------------------------------------------------- dispatch

_SMALL_N_XLA = 256   # below this, pallas_call fixed cost + lane-sparse stores lose to XLA


def _normalize_adj_xla(adj, out_dtype):
    A = jnp.maximum(adj.astype(jnp.float32), 0.0)
    dinv = lax.rsqrt(jnp.sum(A, axis=1) + 1e-10)
    return (dinv[:, None] * A * dinv[None, :]).astype(out_dtype)


def normalize_adj(adj, *, out_dtype=None, impl=None, row_tile=None):
    """L = D^-1/2 relu(adj) D^-1/2, computed exactly once."""
    n = adj.shape[0]
    assert adj.shape == (n, n)
    out_dtype = adj.dtype if out_dtype is None else out_dtype
    out_bytes = jnp.dtype(out_dtype).itemsize
    vmem_limit = _vmem_limit_bytes()

    if impl is None:
        if n <= _SMALL_N_XLA:
            impl = "xla"
        elif 2 * n * n * (4 + out_bytes) <= int(vmem_limit * 0.9):
            impl = "fused"        # adj fits VMEM (double-buffered) -> single HBM read
        else:
            impl = "tiled"

    if impl == "xla":
        return _normalize_adj_xla(adj, out_dtype)
    if impl == "fused":
        return _normalize_adj_fused(adj, out_dtype, vmem_limit)
    return _normalize_adj_tiled(adj, out_dtype, vmem_limit, row_tile)


def dynamic_graph_learner(x, adj, num_heads=4, *, broadcast=True,
                          out_dtype=None, impl=None):
    """Pallas implementation of DynamicGraphLearner.forward.

    NOTE: the [B, num_heads, n, n] broadcast mirrors PyTorch's .expand view; keep
    it consumed inside the same jit (or pass broadcast=False and broadcast at the
    consumer) so XLA never materializes B*H*n^2 words at a jit boundary.
    """
    B, n = x.shape[0], x.shape[1]
    assert adj.shape == (n, n)
    L = normalize_adj(adj, out_dtype=out_dtype, impl=impl)          # computed once
    if not broadcast:
        return L
    return jnp.broadcast_to(L[None, None], (B, num_heads, n, n))


# ----------------------------------------------------------------------- reference

def _reference(x, adj, num_heads=4):
    B, n = x.shape[0], x.shape[1]
    A = jnp.maximum(adj.astype(jnp.float32), 0.0)
    dinv = 1.0 / jnp.sqrt(jnp.sum(A, axis=1) + 1e-10)
    L = dinv[:, None] * A * dinv[None, :]
    return jnp.broadcast_to(L[None, None], (B, num_heads, n, n))


if __name__ == "__main__":
    key = jax.random.PRNGKey(0)
    B, emb, num_heads = 2, 32, 4

    def make_inputs(k, n):
        kx, ka = jax.random.split(k)
        x = jax.random.normal(kx, (B, n, emb), dtype=jnp.float32)
        xavier_std = (2.0 / (n + n)) ** 0.5          # deterministic xavier_normal_
        adj = xavier_std * jax.random.normal(ka, (n, n), dtype=jnp.float32)
        return x, adj

    k1, k2, k3 = jax.random.split(key, 3)

    # 1) Production-size n=16 -> default dispatch (pure-XLA small-n fast path).
    x, adj = make_inputs(k1, 16)
    out = jax.block_until_ready(dynamic_graph_learner(x, adj, num_heads=num_heads))
    ref = jax.block_until_ready(_reference(x, adj, num_heads=num_heads))
    assert out.shape == (B, num_heads, 16, 16)
    assert jnp.allclose(out, ref, atol=1e-5, rtol=1e-5)

    # 2) Fused single-step Pallas kernel (dinv computed in-kernel, one adj read).
    x, adj = make_inputs(k2, 256)
    out = jax.block_until_ready(
        dynamic_graph_learner(x, adj, num_heads=num_heads, impl="fused"))
    ref = jax.block_until_ready(_reference(x, adj, num_heads=num_heads))
    assert out.shape == (B, num_heads, 256, 256)
    assert jnp.allclose(out, ref, atol=1e-5, rtol=1e-5)

    # 3) Tiled large-n fallback, forced at a non-multiple n to exercise the
    #    padded last grid block (review correctness concern).
    x, adj = make_inputs(k3, 200)
    L_tiled = jax.block_until_ready(normalize_adj(adj, impl="tiled", row_tile=128))
    L_ref = jax.block_until_ready(_reference(x, adj, num_heads=1))[0, 0]
    assert L_tiled.shape == (200, 200)
    assert jnp.allclose(L_tiled, L_ref, atol=1e-5, rtol=1e-5)

    print("KERNEL_OK")
</pallas_src>

<mosaic_0001>
module attributes {stable_mosaic.version = 11 : i64} {
  func.func @_fused_normalize_kernel(%arg0: i32, %arg1: memref<256x256xf32, #tpu.memory_space<vmem>>, %arg2: memref<256x256xf32, #tpu.memory_space<vmem>>) attributes {dimension_semantics = [#tpu.dimension_semantics<arbitrary>], iteration_bounds = array<i64: 1>, scalar_prefetch = 0 : i64, scratch_operands = 0 : i64, tpu.core_type = #tpu.core_type<tc>, window_params = [{pipeline_mode = #tpu.pipeline_mode<synchronous>, transform_indices = @transform_0, window_bounds = array<i64: 256, 256>}, {pipeline_mode = #tpu.pipeline_mode<synchronous>, transform_indices = @transform_1, window_bounds = array<i64: 256, 256>}]} {
    %c0 = arith.constant 0 : index
    %c0_0 = arith.constant 0 : index
    %0 = vector.load %arg1[%c0, %c0_0] : memref<256x256xf32, #tpu.memory_space<vmem>>, vector<256x256xf32>
    %cst = arith.constant 0.000000e+00 : f32
    %1 = vector.broadcast %cst : f32 to vector<256x256xf32>
    %2 = arith.maximumf %0, %1 : vector<256x256xf32>
    %cst_1 = arith.constant dense<0.000000e+00> : vector<256xf32>
    %3 = vector.multi_reduction <add>, %2, %cst_1 [1] : vector<256x256xf32> to vector<256xf32>
    %4 = vector.shape_cast %3 : vector<256xf32> to vector<256x1xf32>
    %cst_2 = arith.constant 1.000000e-10 : f32
    %5 = vector.broadcast %cst_2 : f32 to vector<256x1xf32>
    %6 = arith.addf %4, %5 : vector<256x1xf32>
    %7 = math.rsqrt %6 : vector<256x1xf32>
    %8 = tpu.transpose %7, [1, 0] : vector<256x1xf32> -> vector<1x256xf32>
    %9 = vector.broadcast %7 : vector<256x1xf32> to vector<256x256xf32>
    %10 = arith.mulf %9, %2 : vector<256x256xf32>
    %11 = vector.broadcast %8 : vector<1x256xf32> to vector<256x256xf32>
    %12 = arith.mulf %10, %11 : vector<256x256xf32>
    %c0_3 = arith.constant 0 : index
    %c0_4 = arith.constant 0 : index
    %13 = vector.load %arg2[%c0_3, %c0_4] : memref<256x256xf32, #tpu.memory_space<vmem>>, vector<256x256xf32>
    tpu.vector_store %arg2[%c0_3, %c0_4], %12 {strides = array<i32>} : memref<256x256xf32, #tpu.memory_space<vmem>>, vector<256x256xf32>,
    return
  }
  func.func @transform_0(%arg0: i32) -> (i32, i32) {
    %c0_i32 = arith.constant 0 : i32
    %c0_i32_0 = arith.constant 0 : i32
    %c0_i32_1 = arith.constant 0 : i32
    return %c0_i32, %c0_i32_0 : i32, i32
  }
  func.func @transform_1(%arg0: i32) -> (i32, i32) {
    %c0_i32 = arith.constant 0 : i32
    %c0_i32_0 = arith.constant 0 : i32
    %c0_i32_1 = arith.constant 0 : i32
    return %c0_i32, %c0_i32_0 : i32, i32
  }
}

</mosaic_0001>

<llo_original>
// kernel: tpu_custom_call.1
$region0: #{tpu_custom_call.1}
  #allocation0 [shape = 'u32[]', space=smem, size = 0x4, offset = 0x4, fixed_abs, tag = 'smem constant byte address 0x4 - core index']
  #allocation1 [shape = 'u32[72,128]{1,0:T(1,128)}', space=vmem, size = 0x9000, scoped, tag = 'internal scratch']
  %s0 = inlined_call_operand.hbm [shape: f32[256,256], index: 0, kind: input, shape index: {}]
  %s1 = inlined_call_operand.hbm [shape: f32[256,256], index: 1, kind: output, shape index: {}]
  %s2 = sld [smem:[#allocation0]]
  $region18: #{tpu_custom_call.1} parent=0
    _
  %s4 = ssub.s32 1, %s2
  %s5 = scalar_select 0, %s4, %s2
  $region1: #{tpu_custom_call.1} parent=0
    #allocation2 [shape = 'u8[262144]{0}', space=vmem, size = 0x40000, scoped, tag = 'input window, operand 0, single buffered']
    #allocation3 [shape = 's32[1]{0}', space=sflag, size = 0x4, scoped, tag = 'scoped memory for tpu_custom_call.1']
    #allocation4 [shape = 's32[1]{0}', space=sflag, size = 0x4, scoped, tag = 'scoped memory for tpu_custom_call.1']
    #allocation5 [shape = 'u8[262144]{0}', space=vmem, size = 0x40000, scoped, tag = 'output window, operand 0, single buffered']
    %6 = vsyncpa [#allocation3], 0
    %7 = vsyncpa [#allocation4], 0
    // Predicated region
    $region2: #{tpu_custom_call.1} parent=1 // pred_check
      _
    $region3: #{tpu_custom_call.1} parent=1 // pred_check_branch
      %9 = sbr.rel (0) target = $region5
    $region4: #{tpu_custom_call.1} parent=1 // pred_region
      %11 = vsyncadd [#allocation3], 0
      %s12 = sshll.u32 %s0, 4
      %s13 = int_to_ptr.hbm [resolvable:$true] %s12
      %s14 = sshll.u32 [#allocation2], 4
      %s15 = int_to_ptr.vmem [resolvable:$true] %s14
      %20 = dma.hbm_to_vmem [thread:$0]  %s13, 8192, %s15, [#allocation3], 256, 256, 16
    $region5: #{tpu_custom_call.1} parent=1 // pred_fallthru
      _
    // Predicated region
    $region6: #{tpu_custom_call.1} parent=1 // pred_check
      _
    $region7: #{tpu_custom_call.1} parent=1 // pred_check_branch
      %22 = sbr.rel (0) target = $region9
    $region8: #{tpu_custom_call.1} parent=1 // pred_region
      %24 = dma.done [#allocation3], 8192
    $region9: #{tpu_custom_call.1} parent=1 // pred_fallthru
      _
    %v25 = vld [vmem:[#allocation2] sm:$0xff]
    %v26 = vld [vmem:[#allocation2 + $0x8] sm:$0xff]
    %v27 = vld [vmem:[#allocation2 + $0x10] sm:$0xff]
    %v28 = vld [vmem:[#allocation2 + $0x18] sm:$0xff]
    %v29 = vld [vmem:[#allocation2 + $0x20] sm:$0xff]
    %v30 = vld [vmem:[#allocation2 + $0x28] sm:$0xff]
    %v31 = vld [vmem:[#allocation2 + $0x30] sm:$0xff]
    %v32 = vld [vmem:[#allocation2 + $0x38] sm:$0xff]
    %v33 = vld [vmem:[#allocation2 + $0x40] sm:$0xff]
    %v34 = vld [vmem:[#allocation2 + $0x48] sm:$0xff]
    %v35 = vld [vmem:[#allocation2 + $0x50] sm:$0xff]
    %v36 = vld [vmem:[#allocation2 + $0x58] sm:$0xff]
    %v37 = vld [vmem:[#allocation2 + $0x60] sm:$0xff]
    %v38 = vld [vmem:[#allocation2 + $0x68] sm:$0xff]
    %v39 = vld [vmem:[#allocation2 + $0x70] sm:$0xff]
    %v40 = vld [vmem:[#allocation2 + $0x78] sm:$0xff]
    %v41 = vld [vmem:[#allocation2 + $0x80] sm:$0xff]
    %v42 = vld [vmem:[#allocation2 + $0x88] sm:$0xff]
    %v43 = vld [vmem:[#allocation2 + $0x90] sm:$0xff]
    %v44 = vld [vmem:[#allocation2 + $0x98] sm:$0xff]
    %v45 = vld [vmem:[#allocation2 + $0xa0] sm:$0xff]
    %v46 = vld [vmem:[#allocation2 + $0xa8] sm:$0xff]
    %v47 = vld [vmem:[#allocation2 + $0xb0] sm:$0xff]
    %v48 = vld [vmem:[#allocation2 + $0xb8] sm:$0xff]
    %v49 = vld [vmem:[#allocation2 + $0xc0] sm:$0xff]
    %v50 = vld [vmem:[#allocation2 + $0xc8] sm:$0xff]
    %v51 = vld [vmem:[#allocation2 + $0xd0] sm:$0xff]
    %v52 = vld [vmem:[#allocation2 + $0xd8] sm:$0xff]
    %v53 = vld [vmem:[#allocation2 + $0xe0] sm:$0xff]
    %v54 = vld [vmem:[#allocation2 + $0xe8] sm:$0xff]
    %v55 = vld [vmem:[#allocation2 + $0xf0] sm:$0xff]
    %v56 = vld [vmem:[#allocation2 + $0xf8] sm:$0xff]
    %v57 = vld [vmem:[#allocation2 + $0x100] sm:$0xff]
    %v58 = vld [vmem:[#allocation2 + $0x108] sm:$0xff]
    %v59 = vld [vmem:[#allocation2 + $0x110] sm:$0xff]
    %v60 = vld [vmem:[#allocation2 + $0x118] sm:$0xff]
    %v61 = vld [vmem:[#allocation2 + $0x120] sm:$0xff]
    %v62 = vld [vmem:[#allocation2 + $0x128] sm:$0xff]
    %v63 = vld [vmem:[#allocation2 + $0x130] sm:$0xff]
    %v64 = vld [vmem:[#allocation2 + $0x138] sm:$0xff]
    %v65 = vld [vmem:[#allocation2 + $0x140] sm:$0xff]
    %v66 = vld [vmem:[#allocation2 + $0x148] sm:$0xff]
    %v67 = vld [vmem:[#allocation2 + $0x150] sm:$0xff]
    %v68 = vld [vmem:[#allocation2 + $0x158] sm:$0xff]
    %v69 = vld [vmem:[#allocation2 + $0x160] sm:$0xff]
    %v70 = vld [vmem:[#allocation2 + $0x168] sm:$0xff]
    %v71 = vld [vmem:[#allocation2 + $0x170] sm:$0xff]
    %v72 = vld [vmem:[#allocation2 + $0x178] sm:$0xff]
    %v73 = vld [vmem:[#allocation2 + $0x180] sm:$0xff]
    %v74 = vld [vmem:[#allocation2 + $0x188] sm:$0xff]
    %v75 = vld [vmem:[#allocation2 + $0x190] sm:$0xff]
    %v76 = vld [vmem:[#allocation2 + $0x198] sm:$0xff]
    %v77 = vld [vmem:[#allocation2 + $0x1a0] sm:$0xff]
    %v78 = vld [vmem:[#allocation2 + $0x1a8] sm:$0xff]
    %v79 = vld [vmem:[#allocation2 + $0x1b0] sm:$0xff]
    %v80 = vld [vmem:[#allocation2 + $0x1b8] sm:$0xff]
    %v81 = vld [vmem:[#allocation2 + $0x1c0] sm:$0xff]
    %v82 = vld [vmem:[#allocation2 + $0x1c8] sm:$0xff]
    %v83 = vld [vmem:[#allocation2 + $0x1d0] sm:$0xff]
    %v84 = vld [vmem:[#allocation2 + $0x1d8] sm:$0xff]
    %v85 = vld [vmem:[#allocation2 + $0x1e0] sm:$0xff]
    %v86 = vld [vmem:[#allocation2 + $0x1e8] sm:$0xff]
    %v87 = vld [vmem:[#allocation2 + $0x1f0] sm:$0xff]
    %v88 = vld [vmem:[#allocation2 + $0x1f8] sm:$0xff]
    %v89 = vmax.f32 %v25, 0.0
    %v90 = vmax.f32 %v26, 0.0
    %v91 = vmax.f32 %v27, 0.0
    %v92 = vmax.f32 %v28, 0.0
    %v93 = vmax.f32 %v29, 0.0
    %v94 = vmax.f32 %v30, 0.0
    %v95 = vmax.f32 %v31, 0.0
    %v96 = vmax.f32 %v32, 0.0
    %v97 = vmax.f32 %v33, 0.0
    %v98 = vmax.f32 %v34, 0.0
    %v99 = vmax.f32 %v35, 0.0
    %v100 = vmax.f32 %v36, 0.0
    %v101 = vmax.f32 %v37, 0.0
    %v102 = vmax.f32 %v38, 0.0
    %v103 = vmax.f32 %v39, 0.0
    %v104 = vmax.f32 %v40, 0.0
    %v105 = vmax.f32 %v41, 0.0
    %v106 = vmax.f32 %v42, 0.0
    %v107 = vmax.f32 %v43, 0.0
    %v108 = vmax.f32 %v44, 0.0
    %v109 = vmax.f32 %v45, 0.0
    %v110 = vmax.f32 %v46, 0.0
    %v111 = vmax.f32 %v47, 0.0
    %v112 = vmax.f32 %v48, 0.0
    %v113 = vmax.f32 %v49, 0.0
    %v114 = vmax.f32 %v50, 0.0
    %v115 = vmax.f32 %v51, 0.0
    %v116 = vmax.f32 %v52, 0.0
    %v117 = vmax.f32 %v53, 0.0
    %v118 = vmax.f32 %v54, 0.0
    %v119 = vmax.f32 %v55, 0.0
    %v120 = vmax.f32 %v56, 0.0
    %v121 = vmax.f32 %v57, 0.0
    %v122 = vmax.f32 %v58, 0.0
    %v123 = vmax.f32 %v59, 0.0
    %v124 = vmax.f32 %v60, 0.0
    %v125 = vmax.f32 %v61, 0.0
    %v126 = vmax.f32 %v62, 0.0
    %v127 = vmax.f32 %v63, 0.0
    %v128 = vmax.f32 %v64, 0.0
    %v129 = vmax.f32 %v65, 0.0
    %v130 = vmax.f32 %v66, 0.0
    %v131 = vmax.f32 %v67, 0.0
    %v132 = vmax.f32 %v68, 0.0
    %v133 = vmax.f32 %v69, 0.0
    %v134 = vmax.f32 %v70, 0.0
    %v135 = vmax.f32 %v71, 0.0
    %v136 = vmax.f32 %v72, 0.0
    %v137 = vmax.f32 %v73, 0.0
    %v138 = vmax.f32 %v74, 0.0
    %v139 = vmax.f32 %v75, 0.0
    %v140 = vmax.f32 %v76, 0.0
    %v141 = vmax.f32 %v77, 0.0
    %v142 = vmax.f32 %v78, 0.0
    %v143 = vmax.f32 %v79, 0.0
    %v144 = vmax.f32 %v80, 0.0
    %v145 = vmax.f32 %v81, 0.0
    %v146 = vmax.f32 %v82, 0.0
    %v147 = vmax.f32 %v83, 0.0
    %v148 = vmax.f32 %v84, 0.0
    %v149 = vmax.f32 %v85, 0.0
    %v150 = vmax.f32 %v86, 0.0
    %v151 = vmax.f32 %v87, 0.0
    %v152 = vmax.f32 %v88, 0.0
    %v153 = vadd.f32 %v89, %v90
    %154 = vadd.xlane.f32.xlu0 %v153
    %v155 = vpop.xlane.xlu0 %154
    %v156 = vadd.f32 %v91, %v92
    %157 = vadd.xlane.f32.xlu0 %v156
    %v158 = vpop.xlane.xlu0 %157
    %v159 = vadd.f32 %v93, %v94
    %160 = vadd.xlane.f32.xlu0 %v159
    %v161 = vpop.xlane.xlu0 %160
    %v162 = vadd.f32 %v95, %v96
    %163 = vadd.xlane.f32.xlu0 %v162
    %v164 = vpop.xlane.xlu0 %163
    %v165 = vadd.f32 %v97, %v98
    %166 = vadd.xlane.f32.xlu0 %v165
    %v167 = vpop.xlane.xlu0 %166
    %v168 = vadd.f32 %v99, %v100
    %169 = vadd.xlane.f32.xlu0 %v168
    %v170 = vpop.xlane.xlu0 %169
    %v171 = vadd.f32 %v101, %v102
    %172 = vadd.xlane.f32.xlu0 %v171
    %v173 = vpop.xlane.xlu0 %172
    %v174 = vadd.f32 %v103, %v104
    %175 = vadd.xlane.f32.xlu0 %v174
    %v176 = vpop.xlane.xlu0 %175
    %v177 = vadd.f32 %v105, %v106
    %178 = vadd.xlane.f32.xlu0 %v177
    %v179 = vpop.xlane.xlu0 %178
    %v180 = vadd.f32 %v107, %v108
    %181 = vadd.xlane.f32.xlu0 %v180
    %v182 = vpop.xlane.xlu0 %181
    %v183 = vadd.f32 %v109, %v110
    %184 = vadd.xlane.f32.xlu0 %v183
    %v185 = vpop.xlane.xlu0 %184
    %v186 = vadd.f32 %v111, %v112
    %187 = vadd.xlane.f32.xlu0 %v186
    %v188 = vpop.xlane.xlu0 %187
    %v189 = vadd.f32 %v113, %v114
    %190 = vadd.xlane.f32.xlu0 %v189
    %v191 = vpop.xlane.xlu0 %190
    %v192 = vadd.f32 %v115, %v116
    %193 = vadd.xlane.f32.xlu0 %v192
    %v194 = vpop.xlane.xlu0 %193
    %v195 = vadd.f32 %v117, %v118
    %196 = vadd.xlane.f32.xlu0 %v195
    %v197 = vpop.xlane.xlu0 %196
    %v198 = vadd.f32 %v119, %v120
    %199 = vadd.xlane.f32.xlu0 %v198
    %v200 = vpop.xlane.xlu0 %199
    %v201 = vadd.f32 %v121, %v122
    %202 = vadd.xlane.f32.xlu0 %v201
    %v203 = vpop.xlane.xlu0 %202
    %v204 = vadd.f32 %v123, %v124
    %205 = vadd.xlane.f32.xlu0 %v204
    %v206 = vpop.xlane.xlu0 %205
    %v207 = vadd.f32 %v125, %v126
    %208 = vadd.xlane.f32.xlu0 %v207
    %v209 = vpop.xlane.xlu0 %208
    %v210 = vadd.f32 %v127, %v128
    %211 = vadd.xlane.f32.xlu0 %v210
    %v212 = vpop.xlane.xlu0 %211
    %v213 = vadd.f32 %v129, %v130
    %214 = vadd.xlane.f32.xlu0 %v213
    %v215 = vpop.xlane.xlu0 %214
    %v216 = vadd.f32 %v131, %v132
    %217 = vadd.xlane.f32.xlu0 %v216
    %v218 = vpop.xlane.xlu0 %217
    %v219 = vadd.f32 %v133, %v134
    %220 = vadd.xlane.f32.xlu0 %v219
    %v221 = vpop.xlane.xlu0 %220
    %v222 = vadd.f32 %v135, %v136
    %223 = vadd.xlane.f32.xlu0 %v222
    %v224 = vpop.xlane.xlu0 %223
    %v225 = vadd.f32 %v137, %v138
    %226 = vadd.xlane.f32.xlu0 %v225
    %v227 = vpop.xlane.xlu0 %226
    %v228 = vadd.f32 %v139, %v140
    %229 = vadd.xlane.f32.xlu0 %v228
    %v230 = vpop.xlane.xlu0 %229
    %v231 = vadd.f32 %v141, %v142
    %232 = vadd.xlane.f32.xlu0 %v231
    %v233 = vpop.xlane.xlu0 %232
    %v234 = vadd.f32 %v143, %v144
    %235 = vadd.xlane.f32.xlu0 %v234
    %v236 = vpop.xlane.xlu0 %235
    %v237 = vadd.f32 %v145, %v146
    %238 = vadd.xlane.f32.xlu0 %v237
    %v239 = vpop.xlane.xlu0 %238
    %v240 = vadd.f32 %v147, %v148
    %241 = vadd.xlane.f32.xlu0 %v240
    %v242 = vpop.xlane.xlu0 %241
    %v243 = vadd.f32 %v149, %v150
    %244 = vadd.xlane.f32.xlu0 %v243
    %v245 = vpop.xlane.xlu0 %244
    %v246 = vadd.f32 %v151, %v152
    %247 = vadd.xlane.f32.xlu0 %v246
    %v248 = vpop.xlane.xlu0 %247
    %v249 = vadd.f32 %v155, 1e-10
    %v250 = vadd.f32 %v158, 1e-10
    %v251 = vadd.f32 %v161, 1e-10
    %v252 = vadd.f32 %v164, 1e-10
    %v253 = vadd.f32 %v167, 1e-10
    %v254 = vadd.f32 %v170, 1e-10
    %v255 = vadd.f32 %v173, 1e-10
    %v256 = vadd.f32 %v176, 1e-10
    %v257 = vadd.f32 %v179, 1e-10
    %v258 = vadd.f32 %v182, 1e-10
    %v259 = vadd.f32 %v185, 1e-10
    %v260 = vadd.f32 %v188, 1e-10
    %v261 = vadd.f32 %v191, 1e-10
    %v262 = vadd.f32 %v194, 1e-10
    %v263 = vadd.f32 %v197, 1e-10
    %v264 = vadd.f32 %v200, 1e-10
    %v265 = vadd.f32 %v203, 1e-10
    %v266 = vadd.f32 %v206, 1e-10
    %v267 = vadd.f32 %v209, 1e-10
    %v268 = vadd.f32 %v212, 1e-10
    %v269 = vadd.f32 %v215, 1e-10
    %v270 = vadd.f32 %v218, 1e-10
    %v271 = vadd.f32 %v221, 1e-10
    %v272 = vadd.f32 %v224, 1e-10
    %v273 = vadd.f32 %v227, 1e-10
    %v274 = vadd.f32 %v230, 1e-10
    %v275 = vadd.f32 %v233, 1e-10
    %v276 = vadd.f32 %v236, 1e-10
    %v277 = vadd.f32 %v239, 1e-10
    %v278 = vadd.f32 %v242, 1e-10
    %v279 = vadd.f32 %v245, 1e-10
    %v280 = vadd.f32 %v248, 1e-10
    %v281 = vrsqrt.pop %v249
    %v282 = vmul.f32 %v281, %v249
    %v283 = vmul.f32 %v282, %v281
    %v284 = vmul.f32 0.5, %v283
    %v285 = vsub.f32 1.5, %v284
    %v286 = vmul.f32 %v281, %v285
    %vm287 = vweird.f32 %v249
    %vm288 = vweird.f32 %v281
    %vm289 = vmor %vm287, %vm288
    %v290 = vsel %vm289, %v281, %v286
    %v291 = vrsqrt.pop %v250
    %v292 = vmul.f32 %v291, %v250
    %v293 = vmul.f32 %v292, %v291
    %v294 = vmul.f32 0.5, %v293
    %v295 = vsub.f32 1.5, %v294
    %v296 = vmul.f32 %v291, %v295
    %vm297 = vweird.f32 %v250
    %vm298 = vweird.f32 %v291
    %vm299 = vmor %vm297, %vm298
    %v300 = vsel %vm299, %v291, %v296
    %v301 = vrsqrt.pop %v251
    %v302 = vmul.f32 %v301, %v251
    %v303 = vmul.f32 %v302, %v301
    %v304 = vmul.f32 0.5, %v303
    %v305 = vsub.f32 1.5, %v304
    %v306 = vmul.f32 %v301, %v305
    %vm307 = vweird.f32 %v251
    %vm308 = vweird.f32 %v301
    %vm309 = vmor %vm307, %vm308
    %v310 = vsel %vm309, %v301, %v306
    %v311 = vrsqrt.pop %v252
    %v312 = vmul.f32 %v311, %v252
    %v313 = vmul.f32 %v312, %v311
    %v314 = vmul.f32 0.5, %v313
    %v315 = vsub.f32 1.5, %v314
    %v316 = vmul.f32 %v311, %v315
    %vm317 = vweird.f32 %v252
    %vm318 = vweird.f32 %v311
    %vm319 = vmor %vm317, %vm318
    %v320 = vsel %vm319, %v311, %v316
    %v321 = vrsqrt.pop %v253
    %v322 = vmul.f32 %v321, %v253
    %v323 = vmul.f32 %v322, %v321
    %v324 = vmul.f32 0.5, %v323
    %v325 = vsub.f32 1.5, %v324
    %v326 = vmul.f32 %v321, %v325
    %vm327 = vweird.f32 %v253
    %vm328 = vweird.f32 %v321
    %vm329 = vmor %vm327, %vm328
    %v330 = vsel %vm329, %v321, %v326
    %v331 = vrsqrt.pop %v254
    %v332 = vmul.f32 %v331, %v254
    %v333 = vmul.f32 %v332, %v331
    %v334 = vmul.f32 0.5, %v333
    %v335 = vsub.f32 1.5, %v334
    %v336 = vmul.f32 %v331, %v335
    %vm337 = vweird.f32 %v254
    %vm338 = vweird.f32 %v331
    %vm339 = vmor %vm337, %vm338
    %v340 = vsel %vm339, %v331, %v336
    %v341 = vrsqrt.pop %v255
    %v342 = vmul.f32 %v341, %v255
    %v343 = vmul.f32 %v342, %v341
    %v344 = vmul.f32 0.5, %v343
    %v345 = vsub.f32 1.5, %v344
    %v346 = vmul.f32 %v341, %v345
    %vm347 = vweird.f32 %v255
    %vm348 = vweird.f32 %v341
    %vm349 = vmor %vm347, %vm348
    %v350 = vsel %vm349, %v341, %v346
    %v351 = vrsqrt.pop %v256
    %v352 = vmul.f32 %v351, %v256
    %v353 = vmul.f32 %v352, %v351
    %v354 = vmul.f32 0.5, %v353
    %v355 = vsub.f32 1.5, %v354
    %v356 = vmul.f32 %v351, %v355
    %vm357 = vweird.f32 %v256
    %vm358 = vweird.f32 %v351
    %vm359 = vmor %vm357, %vm358
    %v360 = vsel %vm359, %v351, %v356
    %v361 = vrsqrt.pop %v257
    %v362 = vmul.f32 %v361, %v257
    %v363 = vmul.f32 %v362, %v361
    %v364 = vmul.f32 0.5, %v363
    %v365 = vsub.f32 1.5, %v364
    %v366 = vmul.f32 %v361, %v365
    %vm367 = vweird.f32 %v257
    %vm368 = vweird.f32 %v361
    %vm369 = vmor %vm367, %vm368
    %v370 = vsel %vm369, %v361, %v366
    %v371 = vrsqrt.pop %v258
    %v372 = vmul.f32 %v371, %v258
    %v373 = vmul.f32 %v372, %v371
    %v374 = vmul.f32 0.5, %v373
    %v375 = vsub.f32 1.5, %v374
    %v376 = vmul.f32 %v371, %v375
    %vm377 = vweird.f32 %v258
    %vm378 = vweird.f32 %v371
    %vm379 = vmor %vm377, %vm378
    %v380 = vsel %vm379, %v371, %v376
    %v381 = vrsqrt.pop %v259
    %v382 = vmul.f32 %v381, %v259
    %v383 = vmul.f32 %v382, %v381
    %v384 = vmul.f32 0.5, %v383
    %v385 = vsub.f32 1.5, %v384
    %v386 = vmul.f32 %v381, %v385
    %vm387 = vweird.f32 %v259
    %vm388 = vweird.f32 %v381
    %vm389 = vmor %vm387, %vm388
    %v390 = vsel %vm389, %v381, %v386
    %v391 = vrsqrt.pop %v260
    %v392 = vmul.f32 %v391, %v260
    %v393 = vmul.f32 %v392, %v391
    %v394 = vmul.f32 0.5, %v393
    %v395 = vsub.f32 1.5, %v394
    %v396 = vmul.f32 %v391, %v395
    %vm397 = vweird.f32 %v260
    %vm398 = vweird.f32 %v391
    %vm399 = vmor %vm397, %vm398
    %v400 = vsel %vm399, %v391, %v396
    %v401 = vrsqrt.pop %v261
    %v402 = vmul.f32 %v401, %v261
    %v403 = vmul.f32 %v402, %v401
    %v404 = vmul.f32 0.5, %v403
    %v405 = vsub.f32 1.5, %v404
    %v406 = vmul.f32 %v401, %v405
    %vm407 = vweird.f32 %v261
    %vm408 = vweird.f32 %v401
    %vm409 = vmor %vm407, %vm408
    %v410 = vsel %vm409, %v401, %v406
    %v411 = vrsqrt.pop %v262
    %v412 = vmul.f32 %v411, %v262
    %v413 = vmul.f32 %v412, %v411
    %v414 = vmul.f32 0.5, %v413
    %v415 = vsub.f32 1.5, %v414
    %v416 = vmul.f32 %v411, %v415
    %vm417 = vweird.f32 %v262
    %vm418 = vweird.f32 %v411
    %vm419 = vmor %vm417, %vm418
    %v420 = vsel %vm419, %v411, %v416
    %v421 = vrsqrt.pop %v263
    %v422 = vmul.f32 %v421, %v263
    %v423 = vmul.f32 %v422, %v421
    %v424 = vmul.f32 0.5, %v423
    %v425 = vsub.f32 1.5, %v424
    %v426 = vmul.f32 %v421, %v425
    %vm427 = vweird.f32 %v263
    %vm428 = vweird.f32 %v421
    %vm429 = vmor %vm427, %vm428
    %v430 = vsel %vm429, %v421, %v426
    %v431 = vrsqrt.pop %v264
    %v432 = vmul.f32 %v431, %v264
    %v433 = vmul.f32 %v432, %v431
    %v434 = vmul.f32 0.5, %v433
    %v435 = vsub.f32 1.5, %v434
    %v436 = vmul.f32 %v431, %v435
    %vm437 = vweird.f32 %v264
    %vm438 = vweird.f32 %v431
    %vm439 = vmor %vm437, %vm438
    %v440 = vsel %vm439, %v431, %v436
    %v441 = vrsqrt.pop %v265
    %v442 = vmul.f32 %v441, %v265
    %v443 = vmul.f32 %v442, %v441
    %v444 = vmul.f32 0.5, %v443
    %v445 = vsub.f32 1.5, %v444
    %v446 = vmul.f32 %v441, %v445
    %vm447 = vweird.f32 %v265
    %vm448 = vweird.f32 %v441
    %vm449 = vmor %vm447, %vm448
    %v450 = vsel %vm449, %v441, %v446
    %v451 = vrsqrt.pop %v266
    %v452 = vmul.f32 %v451, %v266
    %v453 = vmul.f32 %v452, %v451
    %v454 = vmul.f32 0.5, %v453
    %v455 = vsub.f32 1.5, %v454
    %v456 = vmul.f32 %v451, %v455
    %vm457 = vweird.f32 %v266
    %vm458 = vweird.f32 %v451
    %vm459 = vmor %vm457, %vm458
    %v460 = vsel %vm459, %v451, %v456
    %v461 = vrsqrt.pop %v267
    %v462 = vmul.f32 %v461, %v267
    %v463 = vmul.f32 %v462, %v461
    %v464 = vmul.f32 0.5, %v463
    %v465 = vsub.f32 1.5, %v464
    %v466 = vmul.f32 %v461, %v465
    %vm467 = vweird.f32 %v267
    %vm468 = vweird.f32 %v461
    %vm469 = vmor %vm467, %vm468
    %v470 = vsel %vm469, %v461, %v466
    %v471 = vrsqrt.pop %v268
    %v472 = vmul.f32 %v471, %v268
    %v473 = vmul.f32 %v472, %v471
    %v474 = vmul.f32 0.5, %v473
    %v475 = vsub.f32 1.5, %v474
    %v476 = vmul.f32 %v471, %v475
    %vm477 = vweird.f32 %v268
    %vm478 = vweird.f32 %v471
    %vm479 = vmor %vm477, %vm478
    %v480 = vsel %vm479, %v471, %v476
    %v481 = vrsqrt.pop %v269
    %v482 = vmul.f32 %v481, %v269
    %v483 = vmul.f32 %v482, %v481
    %v484 = vmul.f32 0.5, %v483
    %v485 = vsub.f32 1.5, %v484
    %v486 = vmul.f32 %v481, %v485
    %vm487 = vweird.f32 %v269
    %vm488 = vweird.f32 %v481
    %vm489 = vmor %vm487, %vm488
    %v490 = vsel %vm489, %v481, %v486
    %v491 = vrsqrt.pop %v270
    %v492 = vmul.f32 %v491, %v270
    %v493 = vmul.f32 %v492, %v491
    %v494 = vmul.f32 0.5, %v493
    %v495 = vsub.f32 1.5, %v494
    %v496 = vmul.f32 %v491, %v495
    %vm497 = vweird.f32 %v270
    %vm498 = vweird.f32 %v491
    %vm499 = vmor %vm497, %vm498
    %v500 = vsel %vm499, %v491, %v496
    %v501 = vrsqrt.pop %v271
    %v502 = vmul.f32 %v501, %v271
    %v503 = vmul.f32 %v502, %v501
    %v504 = vmul.f32 0.5, %v503
    %v505 = vsub.f32 1.5, %v504
    %v506 = vmul.f32 %v501, %v505
    %vm507 = vweird.f32 %v271
    %vm508 = vweird.f32 %v501
    %vm509 = vmor %vm507, %vm508
    %v510 = vsel %vm509, %v501, %v506
    %v511 = vrsqrt.pop %v272
    %v512 = vmul.f32 %v511, %v272
    %v513 = vmul.f32 %v512, %v511
    %v514 = vmul.f32 0.5, %v513
    %v515 = vsub.f32 1.5, %v514
    %v516 = vmul.f32 %v511, %v515
    %vm517 = vweird.f32 %v272
    %vm518 = vweird.f32 %v511
    %vm519 = vmor %vm517, %vm518
    %v520 = vsel %vm519, %v511, %v516
    %v521 = vrsqrt.pop %v273
    %v522 = vmul.f32 %v521, %v273
    %v523 = vmul.f32 %v522, %v521
    %v524 = vmul.f32 0.5, %v523
    %v525 = vsub.f32 1.5, %v524
    %v526 = vmul.f32 %v521, %v525
    %vm527 = vweird.f32 %v273
    %vm528 = vweird.f32 %v521
    %vm529 = vmor %vm527, %vm528
    %v530 = vsel %vm529, %v521, %v526
    %v531 = vrsqrt.pop %v274
    %v532 = vmul.f32 %v531, %v274
    %v533 = vmul.f32 %v532, %v531
    %v534 = vmul.f32 0.5, %v533
    %v535 = vsub.f32 1.5, %v534
    %v536 = vmul.f32 %v531, %v535
    %vm537 = vweird.f32 %v274
    %vm538 = vweird.f32 %v531
    %vm539 = vmor %vm537, %vm538
    %v540 = vsel %vm539, %v531, %v536
    %v541 = vrsqrt.pop %v275
    %v542 = vmul.f32 %v541, %v275
    %v543 = vmul.f32 %v542, %v541
    %v544 = vmul.f32 0.5, %v543
    %v545 = vsub.f32 1.5, %v544
    %v546 = vmul.f32 %v541, %v545
    %vm547 = vweird.f32 %v275
    %vm548 = vweird.f32 %v541
    %vm549 = vmor %vm547, %vm548
    %v550 = vsel %vm549, %v541, %v546
    %v551 = vrsqrt.pop %v276
    %v552 = vmul.f32 %v551, %v276
    %v553 = vmul.f32 %v552, %v551
    %v554 = vmul.f32 0.5, %v553
    %v555 = vsub.f32 1.5, %v554
    %v556 = vmul.f32 %v551, %v555
    %vm557 = vweird.f32 %v276
    %vm558 = vweird.f32 %v551
    %vm559 = vmor %vm557, %vm558
    %v560 = vsel %vm559, %v551, %v556
    %v561 = vrsqrt.pop %v277
    %v562 = vmul.f32 %v561, %v277
    %v563 = vmul.f32 %v562, %v561
    %v564 = vmul.f32 0.5, %v563
    %v565 = vsub.f32 1.5, %v564
    %v566 = vmul.f32 %v561, %v565
    %vm567 = vweird.f32 %v277
    %vm568 = vweird.f32 %v561
    %vm569 = vmor %vm567, %vm568
    %v570 = vsel %vm569, %v561, %v566
    %v571 = vrsqrt.pop %v278
    %v572 = vmul.f32 %v571, %v278
    %v573 = vmul.f32 %v572, %v571
    %v574 = vmul.f32 0.5, %v573
    %v575 = vsub.f32 1.5, %v574
    %v576 = vmul.f32 %v571, %v575
    %vm577 = vweird.f32 %v278
    %vm578 = vweird.f32 %v571
    %vm579 = vmor %vm577, %vm578
    %v580 = vsel %vm579, %v571, %v576
    %v581 = vrsqrt.pop %v279
    %v582 = vmul.f32 %v581, %v279
    %v583 = vmul.f32 %v582, %v581
    %v584 = vmul.f32 0.5, %v583
    %v585 = vsub.f32 1.5, %v584
    %v586 = vmul.f32 %v581, %v585
    %vm587 = vweird.f32 %v279
    %vm588 = vweird.f32 %v581
    %vm589 = vmor %vm587, %vm588
    %v590 = vsel %vm589, %v581, %v586
    %v591 = vrsqrt.pop %v280
    %v592 = vmul.f32 %v591, %v280
    %v593 = vmul.f32 %v592, %v591
    %v594 = vmul.f32 0.5, %v593
    %v595 = vsub.f32 1.5, %v594
    %v596 = vmul.f32 %v591, %v595
    %vm597 = vweird.f32 %v280
    %vm598 = vweird.f32 %v591
    %vm599 = vmor %vm597, %vm598
    %v600 = vsel %vm599, %v591, %v596
    %601 = vxpose.xlu0.b32.start [1/16] %v290, 128
    %602 = vxpose.xlu0.b32.cont [2/16] %v300, 128
    %603 = vxpose.xlu0.b32.cont [3/16] %v310, 128
    %604 = vxpose.xlu0.b32.cont [4/16] %v320, 128
    %605 = vxpose.xlu0.b32.cont [5/16] %v330, 128
    %606 = vxpose.xlu0.b32.cont [6/16] %v340, 128
    %607 = vxpose.xlu0.b32.cont [7/16] %v350, 128
    %608 = vxpose.xlu0.b32.cont [8/16] %v360, 128
    %609 = vxpose.xlu0.b32.cont [9/16] %v370, 128
    %610 = vxpose.xlu0.b32.cont [10/16] %v380, 128
    %611 = vxpose.xlu0.b32.cont [11/16] %v390, 128
    %612 = vxpose.xlu0.b32.cont [12/16] %v400, 128
    %613 = vxpose.xlu0.b32.cont [13/16] %v410, 128
    %614 = vxpose.xlu0.b32.cont [14/16] %v420, 128
    %615 = vxpose.xlu0.b32.cont [15/16] %v430, 128
    %616 = vxpose.xlu0.b32.end [16/16] %v440, 128
    %v617 = vpop.trf.xlu0
    %v618 = vpop.trf.xlu0
    %v619 = vpop.trf.xlu0
    %v620 = vpop.trf.xlu0
    %v621 = vpop.trf.xlu0
    %v622 = vpop.trf.xlu0
    %v623 = vpop.trf.xlu0
    %v624 = vpop.trf.xlu0
    %v625 = vpop.trf.xlu0
    %v626 = vpop.trf.xlu0
    %v627 = vpop.trf.xlu0
    %v628 = vpop.trf.xlu0
    %v629 = vpop.trf.xlu0
    %v630 = vpop.trf.xlu0
    %v631 = vpop.trf.xlu0
    %v632 = vpop.trf.xlu0
    %633 = vxpose.xlu0.b32.start [1/16] %v450, 128
    %634 = vxpose.xlu0.b32.cont [2/16] %v460, 128
    %635 = vxpose.xlu0.b32.cont [3/16] %v470, 128
    %636 = vxpose.xlu0.b32.cont [4/16] %v480, 128
    %637 = vxpose.xlu0.b32.cont [5/16] %v490, 128
    %638 = vxpose.xlu0.b32.cont [6/16] %v500, 128
    %639 = vxpose.xlu0.b32.cont [7/16] %v510, 128
    %640 = vxpose.xlu0.b32.cont [8/16] %v520, 128
    %641 = vxpose.xlu0.b32.cont [9/16] %v530, 128
    %642 = vxpose.xlu0.b32.cont [10/16] %v540, 128
    %643 = vxpose.xlu0.b32.cont [11/16] %v550, 128
    %644 = vxpose.xlu0.b32.cont [12/16] %v560, 128
    %645 = vxpose.xlu0.b32.cont [13/16] %v570, 128
    %646 = vxpose.xlu0.b32.cont [14/16] %v580, 128
    %647 = vxpose.xlu0.b32.cont [15/16] %v590, 128
    %648 = vxpose.xlu0.b32.end [16/16] %v600, 128
    %v649 = vpop.trf.xlu0
    %v650 = vpop.trf.xlu0
    %v651 = vpop.trf.xlu0
    %v652 = vpop.trf.xlu0
    %v653 = vpop.trf.xlu0
    %v654 = vpop.trf.xlu0
    %v655 = vpop.trf.xlu0
    %v656 = vpop.trf.xlu0
    %v657 = vpop.trf.xlu0
    %v658 = vpop.trf.xlu0
    %v659 = vpop.trf.xlu0
    %v660 = vpop.trf.xlu0
    %v661 = vpop.trf.xlu0
    %v662 = vpop.trf.xlu0
    %v663 = vpop.trf.xlu0
    %v664 = vpop.trf.xlu0
    %v665 = vmul.f32 %v290, %v89
    %v666 = vmul.f32 %v290, %v90
    %v667 = vmul.f32 %v300, %v91
    %v668 = vmul.f32 %v300, %v92
    %v669 = vmul.f32 %v310, %v93
    %v670 = vmul.f32 %v310, %v94
    %v671 = vmul.f32 %v320, %v95
    %v672 = vmul.f32 %v320, %v96
    %v673 = vmul.f32 %v330, %v97
    %v674 = vmul.f32 %v330, %v98
    %v675 = vmul.f32 %v340, %v99
    %v676 = vmul.f32 %v340, %v100
    %v677 = vmul.f32 %v350, %v101
    %v678 = vmul.f32 %v350, %v102
    %v679 = vmul.f32 %v360, %v103
    %v680 = vmul.f32 %v360, %v104
    %v681 = vmul.f32 %v370, %v105
    %v682 = vmul.f32 %v370, %v106
    %v683 = vmul.f32 %v380, %v107
    %v684 = vmul.f32 %v380, %v108
    %v685 = vmul.f32 %v390, %v109
    %v686 = vmul.f32 %v390, %v110
    %v687 = vmul.f32 %v400, %v111
    %v688 = vmul.f32 %v400, %v112
    %v689 = vmul.f32 %v410, %v113
    %v690 = vmul.f32 %v410, %v114
    %v691 = vmul.f32 %v420, %v115
    %v692 = vmul.f32 %v420, %v116
    %v693 = vmul.f32 %v430, %v117
    %v694 = vmul.f32 %v430, %v118
    %v695 = vmul.f32 %v440, %v119
    %v696 = vmul.f32 %v440, %v120
    %v697 = vmul.f32 %v450, %v121
    %v698 = vmul.f32 %v450, %v122
    %v699 = vmul.f32 %v460, %v123
    %v700 = vmul.f32 %v460, %v124
    %v701 = vmul.f32 %v470, %v125
    %v702 = vmul.f32 %v470, %v126
    %v703 = vmul.f32 %v480, %v127
    %v704 = vmul.f32 %v480, %v128
    %v705 = vmul.f32 %v490, %v129
    %v706 = vmul.f32 %v490, %v130
    %v707 = vmul.f32 %v500, %v131
    %v708 = vmul.f32 %v500, %v132
    %v709 = vmul.f32 %v510, %v133
    %v710 = vmul.f32 %v510, %v134
    %v711 = vmul.f32 %v520, %v135
    %v712 = vmul.f32 %v520, %v136
    %v713 = vmul.f32 %v530, %v137
    %v714 = vmul.f32 %v530, %v138
    %v715 = vmul.f32 %v540, %v139
    %v716 = vmul.f32 %v540, %v140
    %v717 = vmul.f32 %v550, %v141
    %v718 = vmul.f32 %v550, %v142
    %v719 = vmul.f32 %v560, %v143
    %v720 = vmul.f32 %v560, %v144
    %v721 = vmul.f32 %v570, %v145
    %v722 = vmul.f32 %v570, %v146
    %v723 = vmul.f32 %v580, %v147
    %v724 = vmul.f32 %v580, %v148
    %v725 = vmul.f32 %v590, %v149
    %v726 = vmul.f32 %v590, %v150
    %v727 = vmul.f32 %v600, %v151
    %v728 = vmul.f32 %v600, %v152
    %v729 = vperm.slane %v617, 0
    %v730 = vperm.slane %v649, 0
    %v731 = vmul.f32 %v665, %v729
    %v732 = vmul.f32 %v666, %v730
    %v733 = vmul.f32 %v667, %v729
    %v734 = vmul.f32 %v668, %v730
    %v735 = vmul.f32 %v669, %v729
    %v736 = vmul.f32 %v670, %v730
    %v737 = vmul.f32 %v671, %v729
    %v738 = vmul.f32 %v672, %v730
    %v739 = vmul.f32 %v673, %v729
    %v740 = vmul.f32 %v674, %v730
    %v741 = vmul.f32 %v675, %v729
    %v742 = vmul.f32 %v676, %v730
    %v743 = vmul.f32 %v677, %v729
    %v744 = vmul.f32 %v678, %v730
    %v745 = vmul.f32 %v679, %v729
    %v746 = vmul.f32 %v680, %v730
    %v747 = vmul.f32 %v681, %v729
    %v748 = vmul.f32 %v682, %v730
    %v749 = vmul.f32 %v683, %v729
    %v750 = vmul.f32 %v684, %v730
    %v751 = vmul.f32 %v685, %v729
    %v752 = vmul.f32 %v686, %v730
    %v753 = vmul.f32 %v687, %v729
    %v754 = vmul.f32 %v688, %v730
    %v755 = vmul.f32 %v689, %v729
    %v756 = vmul.f32 %v690, %v730
    %v757 = vmul.f32 %v691, %v729
    %v758 = vmul.f32 %v692, %v730
    %v759 = vmul.f32 %v693, %v729
    %v760 = vmul.f32 %v694, %v730
    %v761 = vmul.f32 %v695, %v729
    %v762 = vmul.f32 %v696, %v730
    %v763 = vmul.f32 %v697, %v729
    %v764 = vmul.f32 %v698, %v730
    %v765 = vmul.f32 %v699, %v729
    %v766 = vmul.f32 %v700, %v730
    %v767 = vmul.f32 %v701, %v729
    %v768 = vmul.f32 %v702, %v730
    %v769 = vmul.f32 %v703, %v729
    %v770 = vmul.f32 %v704, %v730
    %v771 = vmul.f32 %v705, %v729
    %v772 = vmul.f32 %v706, %v730
    %v773 = vmul.f32 %v707, %v729
    %v774 = vmul.f32 %v708, %v730
    %v775 = vmul.f32 %v709, %v729
    %v776 = vmul.f32 %v710, %v730
    %v777 = vmul.f32 %v711, %v729
    %v778 = vmul.f32 %v712, %v730
    %v779 = vmul.f32 %v713, %v729
    %v780 = vmul.f32 %v714, %v730
    %v781 = vmul.f32 %v715, %v729
    %v782 = vmul.f32 %v716, %v730
    %v783 = vmul.f32 %v717, %v729
    %v784 = vmul.f32 %v718, %v730
    %v785 = vmul.f32 %v719, %v729
    %v786 = vmul.f32 %v720, %v730
    %v787 = vmul.f32 %v721, %v729
    %v788 = vmul.f32 %v722, %v730
    %v789 = vmul.f32 %v723, %v729
    %v790 = vmul.f32 %v724, %v730
    %v791 = vmul.f32 %v725, %v729
    %v792 = vmul.f32 %v726, %v730
    %v793 = vmul.f32 %v727, %v729
    %v794 = vmul.f32 %v728, %v730
    %795 = vst [vmem:[#allocation5] sm:$0xff] %v731
    %796 = vst [vmem:[#allocation5 + $0x8] sm:$0xff] %v732
    %797 = vst [vmem:[#allocation5 + $0x10] sm:$0xff] %v733
    %798 = vst [vmem:[#allocation5 + $0x18] sm:$0xff] %v734
    %799 = vst [vmem:[#allocation5 + $0x20] sm:$0xff] %v735
    %800 = vst [vmem:[#allocation5 + $0x28] sm:$0xff] %v736
    %801 = vst [vmem:[#allocation5 + $0x30] sm:$0xff] %v737
    %802 = vst [vmem:[#allocation5 + $0x38] sm:$0xff] %v738
    %803 = vst [vmem:[#allocation5 + $0x40] sm:$0xff] %v739
    %804 = vst [vmem:[#allocation5 + $0x48] sm:$0xff] %v740
    %805 = vst [vmem:[#allocation5 + $0x50] sm:$0xff] %v741
    %806 = vst [vmem:[#allocation5 + $0x58] sm:$0xff] %v742
    %807 = vst [vmem:[#allocation5 + $0x60] sm:$0xff] %v743
    %808 = vst [vmem:[#allocation5 + $0x68] sm:$0xff] %v744
    %809 = vst [vmem:[#allocation5 + $0x70] sm:$0xff] %v745
    %810 = vst [vmem:[#allocation5 + $0x78] sm:$0xff] %v746
    %811 = vst [vmem:[#allocation5 + $0x80] sm:$0xff] %v747
    %812 = vst [vmem:[#allocation5 + $0x88] sm:$0xff] %v748
    %813 = vst [vmem:[#allocation5 + $0x90] sm:$0xff] %v749
    %814 = vst [vmem:[#allocation5 + $0x98] sm:$0xff] %v750
    %815 = vst [vmem:[#allocation5 + $0xa0] sm:$0xff] %v751
    %816 = vst [vmem:[#allocation5 + $0xa8] sm:$0xff] %v752
    %817 = vst [vmem:[#allocation5 + $0xb0] sm:$0xff] %v753
    %818 = vst [vmem:[#allocation5 + $0xb8] sm:$0xff] %v754
    %819 = vst [vmem:[#allocation5 + $0xc0] sm:$0xff] %v755
    %820 = vst [vmem:[#allocation5 + $0xc8] sm:$0xff] %v756
    %821 = vst [vmem:[#allocation5 + $0xd0] sm:$0xff] %v757
    %822 = vst [vmem:[#allocation5 + $0xd8] sm:$0xff] %v758
    %823 = vst [vmem:[#allocation5 + $0xe0] sm:$0xff] %v759
    %824 = vst [vmem:[#allocation5 + $0xe8] sm:$0xff] %v760
    %825 = vst [vmem:[#allocation5 + $0xf0] sm:$0xff] %v761
    %826 = vst [vmem:[#allocation5 + $0xf8] sm:$0xff] %v762
    %827 = vst [vmem:[#allocation5 + $0x100] sm:$0xff] %v763
    %828 = vst [vmem:[#allocation5 + $0x108] sm:$0xff] %v764
    %829 = vst [vmem:[#allocation5 + $0x110] sm:$0xff] %v765
    %830 = vst [vmem:[#allocation5 + $0x118] sm:$0xff] %v766
    %831 = vst [vmem:[#allocation5 + $0x120] sm:$0xff] %v767
    %832 = vst [vmem:[#allocation5 + $0x128] sm:$0xff] %v768
    %833 = vst [vmem:[#allocation5 + $0x130] sm:$0xff] %v769
    %834 = vst [vmem:[#allocation5 + $0x138] sm:$0xff] %v770
    %835 = vst [vmem:[#allocation5 + $0x140] sm:$0xff] %v771
    %836 = vst [vmem:[#allocation5 + $0x148] sm:$0xff] %v772
    %837 = vst [vmem:[#allocation5 + $0x150] sm:$0xff] %v773
    %838 = vst [vmem:[#allocation5 + $0x158] sm:$0xff] %v774
    %839 = vst [vmem:[#allocation5 + $0x160] sm:$0xff] %v775
    %840 = vst [vmem:[#allocation5 + $0x168] sm:$0xff] %v776
    %841 = vst [vmem:[#allocation5 + $0x170] sm:$0xff] %v777
    %842 = vst [vmem:[#allocation5 + $0x178] sm:$0xff] %v778
    %843 = vst [vmem:[#allocation5 + $0x180] sm:$0xff] %v779
    %844 = vst [vmem:[#allocation5 + $0x188] sm:$0xff] %v780
    %845 = vst [vmem:[#allocation5 + $0x190] sm:$0xff] %v781
    %846 = vst [vmem:[#allocation5 + $0x198] sm:$0xff] %v782
    %847 = vst [vmem:[#allocation5 + $0x1a0] sm:$0xff] %v783
    %848 = vst [vmem:[#allocation5 + $0x1a8] sm:$0xff] %v784
    %849 = vst [vmem:[#allocation5 + $0x1b0] sm:$0xff] %v785
    %850 = vst [vmem:[#allocation5 + $0x1b8] sm:$0xff] %v786
    %851 = vst [vmem:[#allocation5 + $0x1c0] sm:$0xff] %v787
    %852 = vst [vmem:[#allocation5 + $0x1c8] sm:$0xff] %v788
    %853 = vst [vmem:[#allocation5 + $0x1d0] sm:$0xff] %v789
    %854 = vst [vmem:[#allocation5 + $0x1d8] sm:$0xff] %v790
    %855 = vst [vmem:[#allocation5 + $0x1e0] sm:$0xff] %v791
    %856 = vst [vmem:[#allocation5 + $0x1e8] sm:$0xff] %v792
    %857 = vst [vmem:[#allocation5 + $0x1f0] sm:$0xff] %v793
    %858 = vst [vmem:[#allocation5 + $0x1f8] sm:$0xff] %v794
    // Predicated region
    $region10: #{tpu_custom_call.1} parent=1 // pred_check
      _
    $region11: #{tpu_custom_call.1} parent=1 // pred_check_branch
      %860 = sbr.rel (0) target = $region13
    $region12: #{tpu_custom_call.1} parent=1 // pred_region
      %862 = vsyncadd [#allocation4], 0
      %s863 = sshll.u32 [#allocation5], 4
      %s864 = int_to_ptr.vmem [resolvable:$true] %s863
      %s865 = sshll.u32 %s1, 4
      %s866 = int_to_ptr.hbm [resolvable:$true] %s865
      %871 = dma.vmem_to_hbm [thread:$0]  %s864, 8192, %s866, [#allocation4], 256, 256, 16
    $region13: #{tpu_custom_call.1} parent=1 // pred_fallthru
      _
    // Predicated region
    $region14: #{tpu_custom_call.1} parent=1 // pred_check
      _
    $region15: #{tpu_custom_call.1} parent=1 // pred_check_branch
      %873 = sbr.rel (0) target = $region17
    $region16: #{tpu_custom_call.1} parent=1 // pred_region
      %875 = dma.done [#allocation4], 8192
    $region17: #{tpu_custom_call.1} parent=1 // pred_fallthru
      _
    %876 = vsyncpa [#allocation3], 1
    %877 = vsyncpa [#allocation4], 1

</llo_original>
